<compile_context>
chip_gen: v5e
topology: v5e:2x2
jax: 0.10.0
libtpu: 0.0.40
codegen_flags: <defaults>
</compile_context>

<pallas_src>
import functools

import jax
import jax.numpy as jnp
from jax import lax
from jax.experimental import pallas as pl
from jax.experimental.pallas import tpu as pltpu


# --------------------------------------------------------------------------
# Hardware-aware defaults
# --------------------------------------------------------------------------
def _tpu_info():
    try:
        return pltpu.get_tpu_info()
    except Exception:
        return None


def _vmem_limit_bytes():
    info = _tpu_info()
    phys = getattr(info, "vmem_capacity_bytes", None) if info is not None else None
    if phys is not None and phys >= (100 << 20):
        return 100 << 20          # v5e / v6e: 128 MiB physical VMEM
    return 48 << 20               # v7x (64 MiB physical) / unknown: conservative


def _num_tensorcores():
    info = _tpu_info()
    if info is None:
        return 1
    for name in ("num_cores", "core_count", "num_tensorcores", "tensorcore_count"):
        v = getattr(info, name, None)
        if isinstance(v, int) and v > 0:
            return v
    return 1


# --------------------------------------------------------------------------
# Quaternion helpers (glue: parameter construction)
# --------------------------------------------------------------------------
def make_quaternion_matrix(r, i, j, k):
    """speechbrain quaternion_linear_op weight layout: (4*in_q, 4*out_q)."""
    col_r = jnp.concatenate([r, -i, -j, -k], axis=0)
    col_i = jnp.concatenate([i, r, -k, j], axis=0)
    col_j = jnp.concatenate([j, k, r, -i], axis=0)
    col_k = jnp.concatenate([k, -j, i, r], axis=0)
    return jnp.concatenate([col_r, col_i, col_j, col_k], axis=1)


def init_qlinear_weight(key, in_features, n_neurons):
    """Deterministic quaternion-style (glorot-scaled) init."""
    in_q = in_features // 4
    sigma = 1.0 / jnp.sqrt(2.0 * (in_q + n_neurons))
    kr, ki, kj, kk = jax.random.split(key, 4)
    r = sigma * jax.random.normal(kr, (in_q, n_neurons), jnp.float32)
    i = sigma * jax.random.normal(ki, (in_q, n_neurons), jnp.float32)
    j = sigma * jax.random.normal(kj, (in_q, n_neurons), jnp.float32)
    k = sigma * jax.random.normal(kk, (in_q, n_neurons), jnp.float32)
    return make_quaternion_matrix(r, i, j, k)


def _largest_divisor(n, cap):
    cap = max(1, min(int(cap), int(n)))
    for d in range(cap, 0, -1):
        if n % d == 0:
            return d
    return 1


# --------------------------------------------------------------------------
# Pallas kernels
# --------------------------------------------------------------------------
def _wproj_kernel(x_ref, w_ref, shift_ref, o_ref):
    """Per row tile: w = x @ [Wa|Wz] (BN scale pre-folded) + BN shift."""
    acc = jnp.dot(x_ref[...], w_ref[...], preferred_element_type=jnp.float32)
    o_ref[...] = (acc + shift_ref[...]).astype(o_ref.dtype)


def _ligru_cell_kernel(w_ref, h0_ref, u_hbm, o_ref,
                       u_vmem, h_scr, sem,
                       *, tc, h4, nonlinearity, negative_slope):
    """One (direction, batch-tile, time-chunk) grid step.

    w_ref : (tc, tb, 2*H4) bf16 staged gate pre-activations (time-major)
    o_ref : (tc, tb, H4)   bf16 output slab (direction dim squeezed away)
    Hidden state is carried in f32 VMEM scratch across time chunks.
    """
    d = pl.program_id(0)          # direction: 0 = forward, 1 = backward
    c = pl.program_id(2)          # time-chunk index

    @pl.when(c == 0)
    def _():
        # Single-buffered weight residency: copy the fused U = [Ua|Uz] from
        # HBM once per (direction, batch tile) instead of letting BlockSpec
        # double-buffer a resident weight.
        cp = pltpu.make_async_copy(u_hbm, u_vmem, sem.at[0])
        cp.start()
        cp.wait()
        h_scr[...] = h0_ref[...]

    u = u_vmem[...]
    rev = d != 0                  # backward direction walks the chunk reversed

    def step(k, h):
        t = jnp.where(rev, tc - 1 - k, k)
        # Fused recurrent matmul: one (tb, H4) x (H4, 2*H4) push per step.
        g = w_ref[t].astype(jnp.float32) + jnp.dot(
            h.astype(jnp.bfloat16), u, preferred_element_type=jnp.float32)
        a = g[:, :h4]
        zt = jax.nn.sigmoid(g[:, h4:])
        if nonlinearity == "tanh":
            hcand = jnp.tanh(a)
        else:  # leaky_relu / relu; drop_mask == 1.0 in eval mode
            hcand = jnp.where(a >= 0.0, a, negative_slope * a)
        h_new = hcand + zt * (h - hcand)       # == zt*h + (1-zt)*hcand
        o_ref[t] = h_new.astype(o_ref.dtype)   # bf16 writeback, h stays f32
        return h_new

    h_scr[...] = lax.fori_loop(0, tc, step, h_scr[...], unroll=min(tc, 8))


# --------------------------------------------------------------------------
# Layer wrapper
# --------------------------------------------------------------------------
class QLiGRULayerPallas:
    def __init__(self, input_size, hidden_size, batch_size, key,
                 dropout=0.0, nonlinearity="leaky_relu",
                 normalization="batchnorm", bidirectional=False,
                 row_tile=512, time_chunk=16, batch_tile=None):
        assert input_size % 4 == 0 and hidden_size % 4 == 0
        # NOTE: for production shapes pad hidden_size (=H4) to a multiple of
        # 128 lanes and the batch to a multiple of 8 sublanes; sub-128 widths
        # turn every per-step store into masked vst.msk partial stores.
        self.hq = hidden_size // 4            # == torch module's self.hidden_size
        self.h4 = 4 * self.hq                 # real hidden width
        self.input_size = input_size
        self.bidirectional = bidirectional
        self.nonlinearity = nonlinearity
        self.negative_slope = 0.01 if nonlinearity == "leaky_relu" else 0.0
        self.row_tile = row_tile
        self.time_chunk = time_chunk
        self.batch_tile = batch_tile
        self._vmem_limit = _vmem_limit_bytes()
        self._n_cores = _num_tensorcores()

        H4 = self.h4
        kw, ku = jax.random.split(key, 2)
        # QLinear(input_size, n_neurons = 2*hq) -> (input_size, 2*H4)
        W_big = init_qlinear_weight(kw, input_size, self.hq * 2)
        # QLinear(4*hq,       n_neurons = 2*hq) -> (H4, 2*H4)
        U_big = init_qlinear_weight(ku, H4, self.hq * 2)

        # Eval-mode QBatchNorm folded into per-channel scale/shift; the scale
        # is folded into the W columns (in f32, before the bf16 cast), leaving
        # only the shift add in the stage-1 epilogue.
        # TODO(synk): verify against the exact speechbrain QBatchNorm variant
        # (quaternion-shared variance assumed here) before loading checkpoints.
        num_features = 2 * self.hq
        gamma = jnp.ones((num_features,), jnp.float32)
        beta = jnp.zeros((4 * num_features,), jnp.float32)
        running_mean = jnp.zeros((4 * num_features,), jnp.float32)
        running_var = jnp.ones((num_features,), jnp.float32)
        eps = 1e-4
        scale = jnp.tile(gamma / jnp.sqrt(running_var + eps), 4)   # (2*H4,)
        shift = beta - running_mean * scale
        if normalization != "batchnorm":
            scale = jnp.ones_like(scale)
            shift = jnp.zeros_like(shift)

        # torch's gates.chunk(8)+cat is exactly the first/second-half split of
        # the 2*H4 gate vector, so keeping W/U as single [a|z] matrices and
        # splitting the gate result at the H4 lane boundary is exact.
        self.W = (W_big * scale[None, :]).astype(jnp.bfloat16)     # (I, 2*H4)
        self.U = U_big.astype(jnp.bfloat16)                        # (H4, 2*H4)
        self.shift = shift.reshape(1, 2 * H4)                      # f32

    # ---------------- stage 1: tiled input projection (+ folded BN) ---------
    def _project(self, x_rows):
        rows, I = x_rows.shape
        C2 = 2 * self.h4
        rt = min(self.row_tile, rows)
        if rt < rows:
            rt = max(8, (rt // 8) * 8)

        return pl.pallas_call(
            _wproj_kernel,
            out_shape=jax.ShapeDtypeStruct((rows, C2), jnp.bfloat16),
            grid_spec=pltpu.PrefetchScalarGridSpec(
                num_scalar_prefetch=0,
                grid=(pl.cdiv(rows, rt),),
                in_specs=[
                    pl.BlockSpec((rt, I), lambda r: (r, 0)),     # x rows
                    # TODO(synk): single-buffer the resident weight via
                    # pipeline_mode=pl.Buffered(1) once validated on target jax.
                    pl.BlockSpec((I, C2), lambda r: (0, 0)),     # W (resident)
                    pl.BlockSpec((1, C2), lambda r: (0, 0)),     # BN shift
                ],
                out_specs=pl.BlockSpec((rt, C2), lambda r: (r, 0)),
            ),
            compiler_params=pltpu.CompilerParams(
                dimension_semantics=("parallel",),
                vmem_limit_bytes=self._vmem_limit,
            ),
        )(x_rows, self.W, self.shift)

    # ---------------- stage 2: fused-direction, time-chunked recurrence -----
    def _recur(self, w_tm, h0, ndir):
        T, B, C2 = w_tm.shape
        H4 = self.h4
        tc = _largest_divisor(T, self.time_chunk)
        nc = T // tc
        if self.batch_tile is not None:
            tb = _largest_divisor(B, self.batch_tile)
        else:
            tb = B
            # On multi-TensorCore chips (v7x) give the "parallel" grid at
            # least 2 independent steps so both cores run the serial
            # recurrence (the direction axis already does this when bidir).
            if ndir == 1 and self._n_cores >= 2 and B % 16 == 0:
                tb = B // 2
        nb = B // tb

        def w_idx(d, b, c):
            cc = c + d * (nc - 1 - 2 * c)    # forward: c ; backward: nc-1-c
            return (cc, b, 0)

        def o_idx(d, b, c):
            cc = c + d * (nc - 1 - 2 * c)
            return (d, cc, b, 0)

        kernel = functools.partial(
            _ligru_cell_kernel,
            tc=tc, h4=H4,
            nonlinearity=self.nonlinearity,
            negative_slope=self.negative_slope,
        )
        return pl.pallas_call(
            kernel,
            out_shape=jax.ShapeDtypeStruct((ndir, T, B, H4), jnp.bfloat16),
            grid_spec=pltpu.PrefetchScalarGridSpec(
                num_scalar_prefetch=0,
                grid=(ndir, nb, nc),
                in_specs=[
                    pl.BlockSpec((tc, tb, C2), w_idx),               # staged gates
                    pl.BlockSpec((tb, H4), lambda d, b, c: (b, 0)),  # h0
                    pl.BlockSpec(memory_space=pl.ANY),               # U (raw HBM)
                ],
                out_specs=pl.BlockSpec((None, tc, tb, H4), o_idx),
                scratch_shapes=[
                    pltpu.VMEM((H4, C2), jnp.bfloat16),   # fused U (single buf)
                    pltpu.VMEM((tb, H4), jnp.float32),    # carried h_t
                    pltpu.SemaphoreType.DMA((1,)),
                ],
            ),
            compiler_params=pltpu.CompilerParams(
                dimension_semantics=("parallel", "parallel", "arbitrary"),
                vmem_limit_bytes=self._vmem_limit,
            ),
        )(w_tm, h0, self.U)

    # ---------------- Pallas-backed forward ----------------
    def __call__(self, x, hx=None):
        B, T, I = x.shape
        H4 = self.h4
        ndir = 2 if self.bidirectional else 1

        # Stage 1 consumes bf16 time-major rows; the (B,T,I)->(T,B,I) shuffle
        # is done on bf16 (half the bytes of an f32 transpose).
        # TODO(synk): fold the remaining wrapper transposes (x in, h out) into
        # the kernels (in-kernel major-dim transpose via pltpu.einshape) if
        # they show up in profiles at long sequence lengths.
        x_tm = jnp.transpose(x.astype(jnp.bfloat16), (1, 0, 2))
        w_tm = self._project(x_tm.reshape(T * B, I)).reshape(T, B, 2 * H4)

        if hx is None:
            h0 = jnp.zeros((B, H4), jnp.float32)
        else:
            # NOTE: a single hx is broadcast to both directions; exact match
            # with the torch module only when hx is None / zeros.
            h0 = jnp.broadcast_to(hx.astype(jnp.float32), (B, H4))

        h_all = self._recur(w_tm, h0, ndir)     # (ndir, T, B, H4) bf16
        h_f = jnp.transpose(h_all[0], (1, 0, 2))
        if not self.bidirectional:
            return h_f.astype(jnp.float32)
        # Backward direction was stored at its true time index inside the
        # kernel, so no flip is needed here.
        h_b = jnp.transpose(h_all[1], (1, 0, 2))
        return jnp.concatenate([h_f, h_b], axis=2).astype(jnp.float32)

    # ---------------- pure-JAX reference (verification) ----------------
    def reference(self, x, hx=None):
        if self.bidirectional:
            x = jnp.concatenate([x, jnp.flip(x, axis=1)], axis=0)
        B, T, I = x.shape
        H4 = self.h4

        xb = x.astype(jnp.bfloat16)
        w = (jnp.dot(xb, self.W, preferred_element_type=jnp.float32)
             + self.shift).astype(jnp.bfloat16)

        if hx is None:
            h0 = jnp.zeros((B, H4), jnp.float32)
        else:
            h0 = jnp.broadcast_to(hx.astype(jnp.float32), (B, H4))

        def step(h, w_t):
            g = w_t.astype(jnp.float32) + jnp.dot(
                h.astype(jnp.bfloat16), self.U,
                preferred_element_type=jnp.float32)
            a = g[:, :H4]
            zt = jax.nn.sigmoid(g[:, H4:])
            if self.nonlinearity == "tanh":
                hc = jnp.tanh(a)
            else:
                hc = jnp.where(a >= 0.0, a, self.negative_slope * a)
            h_new = hc + zt * (h - hc)
            return h_new, h_new.astype(jnp.bfloat16)

        _, hs = lax.scan(step, h0, jnp.swapaxes(w, 0, 1))
        h = jnp.swapaxes(hs, 0, 1).astype(jnp.float32)
        if self.bidirectional:
            h_f, h_b = jnp.split(h, 2, axis=0)
            h_b = jnp.flip(h_b, axis=1)
            h = jnp.concatenate([h_f, h_b], axis=2)
        return h


# --------------------------------------------------------------------------
if __name__ == "__main__":
    key = jax.random.PRNGKey(0)
    k_param, k_param_bi, k_x = jax.random.split(key, 3)

    batch, seq, input_size, hidden_size = 8, 16, 16, 32
    x = jax.random.normal(k_x, (batch, seq, input_size), jnp.float32)

    # Unidirectional layer (multi-chunk time grid + row-tiled stage 1).
    layer = QLiGRULayerPallas(
        input_size=input_size, hidden_size=hidden_size, batch_size=batch,
        key=k_param, dropout=0.0, nonlinearity="leaky_relu",
        normalization="batchnorm", bidirectional=False,
        row_tile=64, time_chunk=8)
    h = jax.block_until_ready(layer(x))
    h_ref = jax.block_until_ready(layer.reference(x))
    assert h.shape == (batch, seq, hidden_size), h.shape
    assert jnp.allclose(h, h_ref, atol=1e-2, rtol=1e-2), \
        float(jnp.max(jnp.abs(h - h_ref)))

    # Bidirectional layer (single pallas_call, direction grid axis with
    # time-reversed index maps).
    layer_bi = QLiGRULayerPallas(
        input_size=input_size, hidden_size=hidden_size, batch_size=batch,
        key=k_param_bi, dropout=0.0, nonlinearity="leaky_relu",
        normalization="batchnorm", bidirectional=True,
        row_tile=64, time_chunk=8)
    h_bi = jax.block_until_ready(layer_bi(x))
    h_bi_ref = jax.block_until_ready(layer_bi.reference(x))
    assert h_bi.shape == (batch, seq, 2 * hidden_size), h_bi.shape
    assert jnp.allclose(h_bi, h_bi_ref, atol=1e-2, rtol=1e-2), \
        float(jnp.max(jnp.abs(h_bi - h_bi_ref)))

    print("KERNEL_OK")
</pallas_src>

<mosaic_0001>
module attributes {stable_mosaic.version = 11 : i64} {
  func.func @_wproj_kernel(%arg0: i32, %arg1: memref<64x16xbf16, #tpu.memory_space<vmem>>, %arg2: memref<16x64xbf16, #tpu.memory_space<vmem>>, %arg3: memref<1x64xf32, #tpu.memory_space<vmem>>, %arg4: memref<64x64xbf16, #tpu.memory_space<vmem>>) attributes {dimension_semantics = [#tpu.dimension_semantics<parallel>], iteration_bounds = array<i64: 2>, scalar_prefetch = 0 : i64, scratch_operands = 0 : i64, tpu.core_type = #tpu.core_type<tc>, window_params = [{transform_indices = @transform_0, window_bounds = array<i64: 64, 16>}, {pipeline_mode = #tpu.pipeline_mode<synchronous>, transform_indices = @transform_1, window_bounds = array<i64: 16, 64>}, {pipeline_mode = #tpu.pipeline_mode<synchronous>, transform_indices = @transform_2, window_bounds = array<i64: 1, 64>}, {transform_indices = @transform_3, window_bounds = array<i64: 64, 64>}]} {
    %c0 = arith.constant 0 : index
    %c0_0 = arith.constant 0 : index
    %0 = vector.load %arg1[%c0, %c0_0] : memref<64x16xbf16, #tpu.memory_space<vmem>>, vector<64x16xbf16>
    %c0_1 = arith.constant 0 : index
    %c0_2 = arith.constant 0 : index
    %1 = vector.load %arg2[%c0_1, %c0_2] : memref<16x64xbf16, #tpu.memory_space<vmem>>, vector<16x64xbf16>
    %cst = arith.constant dense<0.000000e+00> : vector<64x64xf32>
    %2 = tpu.matmul %0, %1, %cst {dimension_numbers = #tpu.dot_dimension_numbers<[1], [0], [0], [1], [0, 0, 1, 1], [], []>} : vector<64x16xbf16>, vector<16x64xbf16>, vector<64x64xf32> -> vector<64x64xf32>
    %c0_3 = arith.constant 0 : index
    %c0_4 = arith.constant 0 : index
    %3 = vector.load %arg3[%c0_3, %c0_4] : memref<1x64xf32, #tpu.memory_space<vmem>>, vector<1x64xf32>
    %4 = vector.broadcast %3 : vector<1x64xf32> to vector<64x64xf32>
    %5 = arith.addf %2, %4 : vector<64x64xf32>
    %6 = arith.truncf %5 : vector<64x64xf32> to vector<64x64xbf16>
    %c0_5 = arith.constant 0 : index
    %c0_6 = arith.constant 0 : index
    %7 = vector.load %arg4[%c0_5, %c0_6] : memref<64x64xbf16, #tpu.memory_space<vmem>>, vector<64x64xbf16>
    tpu.vector_store %arg4[%c0_5, %c0_6], %6 {strides = array<i32>} : memref<64x64xbf16, #tpu.memory_space<vmem>>, vector<64x64xbf16>,
    return
  }
  func.func @transform_0(%arg0: i32) -> (i32, i32) {
    %c0_i32 = arith.constant 0 : i32
    %c0_i32_0 = arith.constant 0 : i32
    return %arg0, %c0_i32 : i32, i32
  }
  func.func @transform_1(%arg0: i32) -> (i32, i32) {
    %c0_i32 = arith.constant 0 : i32
    %c0_i32_0 = arith.constant 0 : i32
    %c0_i32_1 = arith.constant 0 : i32
    return %c0_i32, %c0_i32_0 : i32, i32
  }
  func.func @transform_2(%arg0: i32) -> (i32, i32) {
    %c0_i32 = arith.constant 0 : i32
    %c0_i32_0 = arith.constant 0 : i32
    %c0_i32_1 = arith.constant 0 : i32
    return %c0_i32, %c0_i32_0 : i32, i32
  }
  func.func @transform_3(%arg0: i32) -> (i32, i32) {
    %c0_i32 = arith.constant 0 : i32
    %c0_i32_0 = arith.constant 0 : i32
    return %arg0, %c0_i32 : i32, i32
  }
}

</mosaic_0001>

<llo_original>
// kernel: tpu_custom_call.1
$region0: #{tpu_custom_call.1}
  #allocation0 [shape = 'u32[]', space=smem, size = 0x4, offset = 0x4, fixed_abs, tag = 'smem constant byte address 0x4 - core index']
  #allocation1 [shape = 'u32[72,128]{1,0:T(1,128)}', space=vmem, size = 0x9000, scoped, tag = 'internal scratch']
  %s0 = inlined_call_operand.vmem [shape: bf16[128,16], index: 0, kind: input, shape index: {}]
  %s1 = inlined_call_operand.vmem [shape: bf16[16,64], index: 1, kind: input, shape index: {}]
  %s2 = inlined_call_operand.vmem [shape: f32[1,64], index: 2, kind: input, shape index: {}]
  %s3 = inlined_call_operand.vmem [shape: bf16[128,64], index: 3, kind: output, shape index: {}]
  %s4 = sld [smem:[#allocation0]]
  $region45: #{tpu_custom_call.1} parent=0
    _
  %s6 = ssub.s32 1, %s4
  %s7 = scalar_select 0, %s6, %s4
  loop: start=0, step=1, limit=4
  $region2: #{tpu_custom_call.1} parent=0 // loop_pre_header
    _
  $region3: #{tpu_custom_call.1} parent=0 // loop_header
    %s9 = sphi 0, %s13
    %p10 = scmp.ge.s32.totalorder %s9, 4
    %s19 = sphi 0, %s21
    %s22 = sphi 0, %s19
    %s23 = sphi 0, %s22
    %s39 = sphi 0, %s23
    %s43 = sphi 0, %s43
    %s45 = sphi 0, %s43
    %s46 = sphi 0, %s45
    %s60 = sphi 0, %s46
    %s64 = sphi 0, %s64
    %s66 = sphi 0, %s64
    %s67 = sphi 0, %s66
    %s81 = sphi 0, %s67
    %s87 = sphi 0, %s89
    %s90 = sphi 0, %s87
    %s91 = sphi 0, %s90
    %s107 = sphi 0, %s91
  $region4: #{tpu_custom_call.1} parent=0 // loop_header_branch
    %12 = sbr.rel (%p10) target = $region8
  $region5: #{tpu_custom_call.1} parent=0 // loop_body
    %s14 = ssub.s32 %s9, 1
    %s15 = ssub.s32 %s9, 2
    %s16 = sadd.s32 %s9, 1
    %s17 = ssub.s32 %s9, %s16
    %p18 = scmp.eq.s32.totalorder %s17, 0
    %s20 = sadd.s32 %s19, 1
    %s21 = scalar_select %p18, %s19, %s20
    %p24 = pneg %p18
    %p25 = scmp.eq.s32.totalorder %s9, 1
    %p26 = por %p24, %p25
    %p27 = scmp.ne.s32.totalorder %s19, %s22
    %p28 = scmp.eq.s32.totalorder %s9, 0
    %p29 = por %p27, %p28
    %p30 = scmp.ne.s32.totalorder %s19, %s22
    %p31 = scmp.eq.s32.totalorder %s14, 1
    %p32 = por %p30, %p31
    %p33 = scmp.ne.s32.totalorder %s22, %s23
    %p34 = scmp.eq.s32.totalorder %s14, 0
    %p35 = por %p33, %p34
    %p36 = scmp.ne.s32.totalorder %s22, %s23
    %p37 = scmp.eq.s32.totalorder %s15, 1
    %p38 = por %p36, %p37
    %p40 = scmp.ne.s32.totalorder %s23, %s39
    %p41 = scmp.eq.s32.totalorder %s15, 0
    %p42 = por %p40, %p41
    %s44 = sadd.s32 %s43, 1
    %p47 = scmp.eq.s32.totalorder %s9, 1
    %p48 = scmp.ne.s32.totalorder %s43, %s45
    %p49 = scmp.eq.s32.totalorder %s9, 0
    %p50 = por %p48, %p49
    %p51 = scmp.ne.s32.totalorder %s43, %s45
    %p52 = scmp.eq.s32.totalorder %s14, 1
    %p53 = por %p51, %p52
    %p54 = scmp.ne.s32.totalorder %s45, %s46
    %p55 = scmp.eq.s32.totalorder %s14, 0
    %p56 = por %p54, %p55
    %p57 = scmp.ne.s32.totalorder %s45, %s46
    %p58 = scmp.eq.s32.totalorder %s15, 1
    %p59 = por %p57, %p58
    %p61 = scmp.ne.s32.totalorder %s46, %s60
    %p62 = scmp.eq.s32.totalorder %s15, 0
    %p63 = por %p61, %p62
    %s65 = sadd.s32 %s64, 1
    %p68 = scmp.eq.s32.totalorder %s9, 1
    %p69 = scmp.ne.s32.totalorder %s64, %s66
    %p70 = scmp.eq.s32.totalorder %s9, 0
    %p71 = por %p69, %p70
    %p72 = scmp.ne.s32.totalorder %s64, %s66
    %p73 = scmp.eq.s32.totalorder %s14, 1
    %p74 = por %p72, %p73
    %p75 = scmp.ne.s32.totalorder %s66, %s67
    %p76 = scmp.eq.s32.totalorder %s14, 0
    %p77 = por %p75, %p76
    %p78 = scmp.ne.s32.totalorder %s66, %s67
    %p79 = scmp.eq.s32.totalorder %s15, 1
    %p80 = por %p78, %p79
    %p82 = scmp.ne.s32.totalorder %s67, %s81
    %p83 = scmp.eq.s32.totalorder %s15, 0
    %p84 = por %p82, %p83
    %s85 = ssub.s32 %s9, %s16
    %p86 = scmp.eq.s32.totalorder %s85, 0
    %s88 = sadd.s32 %s87, 1
    %s89 = scalar_select %p86, %s87, %s88
    %p92 = pneg %p86
    %p93 = scmp.eq.s32.totalorder %s9, 1
    %p94 = por %p92, %p93
    %p95 = scmp.ne.s32.totalorder %s87, %s90
    %p96 = scmp.eq.s32.totalorder %s9, 0
    %p97 = por %p95, %p96
    %p98 = scmp.ne.s32.totalorder %s87, %s90
    %p99 = scmp.eq.s32.totalorder %s14, 1
    %p100 = por %p98, %p99
    %p101 = scmp.ne.s32.totalorder %s90, %s91
    %p102 = scmp.eq.s32.totalorder %s14, 0
    %p103 = por %p101, %p102
    %p104 = scmp.ne.s32.totalorder %s90, %s91
    %p105 = scmp.eq.s32.totalorder %s15, 1
    %p106 = por %p104, %p105
    %p108 = scmp.ne.s32.totalorder %s91, %s107
    %p109 = scmp.eq.s32.totalorder %s15, 0
    %p110 = por %p108, %p109
    %p111 = scmp.le.s32.totalorder 1, %s9
    %p112 = scmp.lt.s32.totalorder %s9, 3
    %p113 = pnand %p111, %p112
    %p114 = pneg %p113
    // Predicated region
    $region9: #{tpu_custom_call.1} parent=5 // pred_check
      _
    $region10: #{tpu_custom_call.1} parent=5 // pred_check_branch
      %116 = sbr.rel (%p113) target = $region12
    $region11: #{tpu_custom_call.1} parent=5 // pred_region
      %s117 = ssub.s32 %s9, 1
      // Predicated region
      $region13: #{tpu_custom_call.1} parent=11 // pred_check
        %p118 = pneg %p56
      $region14: #{tpu_custom_call.1} parent=11 // pred_check_branch
        %120 = sbr.rel (%p118) target = $region16
      $region15: #{tpu_custom_call.1} parent=11 // pred_region
        _
      $region16: #{tpu_custom_call.1} parent=11 // pred_fallthru
        _
      // Predicated region
      $region17: #{tpu_custom_call.1} parent=11 // pred_check
        %p121 = pneg %p77
      $region18: #{tpu_custom_call.1} parent=11 // pred_check_branch
        %123 = sbr.rel (%p121) target = $region20
      $region19: #{tpu_custom_call.1} parent=11 // pred_region
        _
      $region20: #{tpu_custom_call.1} parent=11 // pred_fallthru
        _
    $region12: #{tpu_custom_call.1} parent=5 // pred_fallthru
      _
    %p124 = scmp.lt.s32.totalorder %s9, 2
    // Predicated region
    $region21: #{tpu_custom_call.1} parent=5 // pred_check
      %p125 = pneg %p124
    $region22: #{tpu_custom_call.1} parent=5 // pred_check_branch
      %127 = sbr.rel (%p125) target = $region24
    $region23: #{tpu_custom_call.1} parent=5 // pred_region
      // Predicated region
      $region25: #{tpu_custom_call.1} parent=23 // pred_check
        %p128 = pneg %p29
      $region26: #{tpu_custom_call.1} parent=23 // pred_check_branch
        %130 = sbr.rel (%p128) target = $region28
      $region27: #{tpu_custom_call.1} parent=23 // pred_region
        %s131 = smul.u32 8, %s9
        %p132 = scmp.lt.s32.totalorder %s131, 15
        %s133 = scalar_select %p132, %s131, 15
        %s134 = smul.addr %s133, 4
        %s135 = scalar_lea.vmem %s0, %s134
        %s136 = smul.u32 8, %s9
      $region28: #{tpu_custom_call.1} parent=23 // pred_fallthru
        _
    $region24: #{tpu_custom_call.1} parent=5 // pred_fallthru
      _
    %p137 = scmp.le.s32.totalorder 1, %s9
    %p138 = scmp.lt.s32.totalorder %s9, 3
    %p139 = pnand %p137, %p138
    %p140 = pneg %p139
    // Predicated region
    $region29: #{tpu_custom_call.1} parent=5 // pred_check
      _
    $region30: #{tpu_custom_call.1} parent=5 // pred_check_branch
      %142 = sbr.rel (%p139) target = $region32
    $region31: #{tpu_custom_call.1} parent=5 // pred_region
      %s143 = ssub.s32 %s9, 1
      %s144 = smul.u32 8, %s14
      %p145 = scmp.lt.s32.totalorder %s144, 15
      %s146 = scalar_select %p145, %s144, 15
      %s147 = smul.addr %s146, 4
      %s148 = scalar_lea.vmem %s0, %s147
      %p149 = pneg %p35
      %p150 = pneg %p32
      %p151 = pneg %p56
      %p152 = pneg %p53
      %p153 = pneg %p77
      %p154 = pneg %p74
      %p155 = pneg %p103
      %p156 = pneg %p100
      %s157 = smul.u32 8, %s14
      %p158 = scmp.lt.s32.totalorder %s157, 15
      %s159 = scalar_select %p158, %s157, 15
      %s160 = smul.addr %s159, 4
      %s161 = scalar_lea.vmem %s3, %s160
      %s162 = smul.u32 8, %s14
      %p163 = scmp.lt.s32.totalorder %s162, 15
      %s164 = scalar_select %p163, %s162, 15
      %s165 = smul.addr %s164, 4
      %s166 = scalar_lea.vmem %s0, %s165
      %s167 = smul.u32 8, %s14
      %s168 = smul.u32 8, %s14
      %p169 = scmp.lt.s32.totalorder %s168, 15
      %s170 = scalar_select %p169, %s168, 15
      %s171 = smul.addr %s170, 4
      %s172 = scalar_lea.vmem %s3, %s171
      %s173 = smul.u32 8, %s14
      %v175 = vld [vmem:[%s166] sm:$0xf]
      %v176 = vld [vmem:[%s166 + $0x4] sm:$0xf]
      %v177 = vld [vmem:[%s166 + $0x8] sm:$0xf]
      %v178 = vld [vmem:[%s166 + $0xc] sm:$0xf]
      %v179 = vld [vmem:[%s166 + $0x10] sm:$0xf]
      %v180 = vld [vmem:[%s166 + $0x14] sm:$0xf]
      %v181 = vld [vmem:[%s166 + $0x18] sm:$0xf]
      %v182 = vld [vmem:[%s166 + $0x1c] sm:$0xf]
      %v183 = vld [vmem:[%s1] sm:$0xf]
      %v184 = vld [vmem:[%s1 + $0x4] sm:$0xf]
      %v185 = vld [vmem:[%s2] sm:$0x1]
      %v187 = vperm.slane %v185, 0
      %v197 = vunpack.c.l.b16 %v175
      %v198 = vunpack.c.l.b16 %v176
      %v199 = vunpack.c.l.b16 %v177
      %v200 = vunpack.c.l.b16 %v178
      %v201 = vunpack.c.l.b16 %v179
      %v202 = vunpack.c.l.b16 %v180
      %v203 = vunpack.c.l.b16 %v181
      %v204 = vunpack.c.l.b16 %v182
      %v205 = vpack.c.b16 %v198, %v197
      %v206 = vpack.c.b16 %v200, %v199
      %v207 = vpack.c.b16 %v202, %v201
      %v208 = vpack.c.b16 %v204, %v203
      %v211 = vunpack.c.l.b16 %v183
      %v212 = vunpack.c.l.b16 %v184
      %v213 = vpack.c.b16 %v212, %v211
      %vm215 = vcmask 130048
      %v217 = vsel %vm215, %v205, 0
      %v220 = vsel %vm215, %v206, 0
      %v223 = vsel %vm215, %v207, 0
      %v226 = vsel %vm215, %v208, 0
      %228 = vmatpush.bf16.msra.mxu0 0
      %229 = vmatpush.bf16.msra.mxu0 0
      %230 = vmatpush.bf16.msra.mxu0 0
      %231 = vmatpush.bf16.msra.mxu0 0
      %232 = vmatpush.bf16.msra.mxu0 0
      %233 = vmatpush.bf16.msra.mxu0 0
      %234 = vmatpush.bf16.msra.mxu0 0
      %235 = vmatpush.bf16.msra.mxu0 %v213
      %236 = vmatmul.bf16.gmra.mxu0 %v217
      %v237 = vpop.f32.mrf.mxu0
      %v238 = vadd.f32 %v187, %v237
      %v239 = vpop.f32.mrf.mxu0
      %v240 = vadd.f32 %v187, %v239
      %241 = vmatmul.bf16.gmra.mxu0 %v220
      %v242 = vpop.f32.mrf.mxu0
      %v243 = vadd.f32 %v187, %v242
      %v244 = vpop.f32.mrf.mxu0
      %v245 = vadd.f32 %v187, %v244
      %246 = vmatmul.bf16.gmra.mxu0 %v223
      %v247 = vpop.f32.mrf.mxu0
      %v248 = vadd.f32 %v187, %v247
      %v249 = vpop.f32.mrf.mxu0
      %v250 = vadd.f32 %v187, %v249
      %251 = vmatmul.bf16.gmra.mxu0 %v226
      %v252 = vpop.f32.mrf.mxu0
      %v253 = vadd.f32 %v187, %v252
      %v254 = vpop.f32.mrf.mxu0
      %v255 = vadd.f32 %v187, %v254
      %256 = vdwg.mxu0
      %v257 = vpack.c.bf16 %v238, %v238
      %v258 = vpack.c.bf16 %v240, %v240
      %v259 = vpack.c.bf16 %v243, %v243
      %v260 = vpack.c.bf16 %v245, %v245
      %v261 = vpack.c.bf16 %v248, %v248
      %v262 = vpack.c.bf16 %v250, %v250
      %v263 = vpack.c.bf16 %v253, %v253
      %v264 = vpack.c.bf16 %v255, %v255
      %vm265 = vcmask 519168
      %266 = vst.msk [vmem:[%s172] sm:$0xf] %vm265, %v257
      %267 = vst.msk [vmem:[%s172 + $0x4] sm:$0xf] %vm265, %v258
      %268 = vst.msk [vmem:[%s172 + $0x8] sm:$0xf] %vm265, %v259
      %269 = vst.msk [vmem:[%s172 + $0xc] sm:$0xf] %vm265, %v260
      %270 = vst.msk [vmem:[%s172 + $0x10] sm:$0xf] %vm265, %v261
      %271 = vst.msk [vmem:[%s172 + $0x14] sm:$0xf] %vm265, %v262
      %272 = vst.msk [vmem:[%s172 + $0x18] sm:$0xf] %vm265, %v263
      %273 = vst.msk [vmem:[%s172 + $0x1c] sm:$0xf] %vm265, %v264
      %s274 = smul.u32 8, %s14
      %p275 = scmp.lt.s32.totalorder %s274, 15
      %s276 = scalar_select %p275, %s274, 15
      %s277 = smul.addr %s276, 4
      %s278 = scalar_lea.vmem %s3, %s277
      // Predicated region
      $region33: #{tpu_custom_call.1} parent=31 // pred_check
        %p279 = pneg %p100
      $region34: #{tpu_custom_call.1} parent=31 // pred_check_branch
        %281 = sbr.rel (%p279) target = $region36
      $region35: #{tpu_custom_call.1} parent=31 // pred_region
        %s282 = smul.u32 8, %s14
      $region36: #{tpu_custom_call.1} parent=31 // pred_fallthru
        _
    $region32: #{tpu_custom_call.1} parent=5 // pred_fallthru
      _
    %p283 = scmp.le.s32.totalorder 2, %s9
    // Predicated region
    $region37: #{tpu_custom_call.1} parent=5 // pred_check
      %p284 = pneg %p283
    $region38: #{tpu_custom_call.1} parent=5 // pred_check_branch
      %286 = sbr.rel (%p284) target = $region40
    $region39: #{tpu_custom_call.1} parent=5 // pred_region
      %s287 = ssub.s32 %s9, 2
      // Predicated region
      $region41: #{tpu_custom_call.1} parent=39 // pred_check
        %p288 = pneg %p106
      $region42: #{tpu_custom_call.1} parent=39 // pred_check_branch
        %290 = sbr.rel (%p288) target = $region44
      $region43: #{tpu_custom_call.1} parent=39 // pred_region
        %s291 = smul.u32 8, %s15
        %p292 = scmp.lt.s32.totalorder %s291, 15
        %s293 = scalar_select %p292, %s291, 15
        %s294 = smul.addr %s293, 4
        %s295 = scalar_lea.vmem %s3, %s294
      $region44: #{tpu_custom_call.1} parent=39 // pred_fallthru
        _
    $region40: #{tpu_custom_call.1} parent=5 // pred_fallthru
      _
  $region6: #{tpu_custom_call.1} parent=0 // loop_footer
    %s13 = sadd.s32 1, %s9
  $region7: #{tpu_custom_call.1} parent=0 // loop_footer_branch
    %8 = sbr.rel target = $region3
  $region8: #{tpu_custom_call.1} parent=0 // loop_exit
    _

</llo_original>
